<compile_context>
chip_gen: v5e
topology: v5e:2x2
jax: 0.10.0
libtpu: 0.0.40
codegen_flags: <defaults>
</compile_context>

<pallas_src>
import math
import functools

import jax
import jax.numpy as jnp
from jax.experimental import pallas as pl
from jax.experimental.pallas import tpu as pltpu


def _attnpool_kernel(x_ref, pos0_ref, possp_ref, wq_ref, bq_ref, wkv_ref, bkv_ref,
                     wc_ref, bc_ref, hsel_ref, hselt_ref, o_ref, *,
                     n_heads: int, ch: int, embed_dim: int, s2_real: int):
    # x_ref    : [Bb, S2p, C]   spatial tokens (S2p = S2 padded to mult. of 8)
    # pos0_ref : [1, C]   f32   positional embedding of the (prepended) mean token
    # possp_ref: [S2p, C] cdt   positional embedding of the spatial tokens
    # wq_ref   : [C, C],  bq_ref : [1, C]        query projection (token 0 only)
    # wkv_ref  : [C, 2C], bkv_ref: [1, 2C]       key/value projection (all tokens)
    # wc_ref   : [C, Dp], bc_ref: [1, Dp]        output projection (Dp lane-padded)
    # hsel_ref : [C, H]  f32  0/1 indicator: channel c belongs to head h
    # hselt_ref: [H, C]  f32  its transpose
    # o_ref    : [Bb, Dp]     pooled output (token 0 after c_proj)
    C = embed_dim
    H = n_heads
    Bb, S2p, _ = x_ref.shape

    x = x_ref[...]                                        # [Bb, S2p, C] compute dtype
    cdt = x.dtype

    # Mean token (f32 accumulation; divide by the REAL spatial token count —
    # padded rows are zero so they do not change the sum).
    mean_tok = jnp.sum(x.astype(jnp.float32), axis=1) * (1.0 / s2_real)   # [Bb, C]
    tok0 = mean_tok + pos0_ref[...]                       # [Bb, C] f32
    tok0_cd = tok0.astype(cdt)

    sp_tok = x + possp_ref[...][None]                     # [Bb, S2p, C] compute dtype

    # Projections: compute-dtype operands, f32 accumulation on the MXU.
    q0 = jnp.dot(tok0_cd, wq_ref[...],
                 preferred_element_type=jnp.float32) + bq_ref[...]           # [Bb, C]
    kv0 = jnp.dot(tok0_cd, wkv_ref[...],
                  preferred_element_type=jnp.float32) + bkv_ref[...]         # [Bb, 2C]
    kv_sp = jnp.dot(sp_tok.reshape(Bb * S2p, C), wkv_ref[...],
                    preferred_element_type=jnp.float32) + bkv_ref[...]       # [Bb*S2p, 2C]
    kv_sp = kv_sp.reshape(Bb, S2p, 2 * C)

    k0, v0 = kv0[:, :C], kv0[:, C:]                       # [Bb, C] f32
    k_sp, v_sp = kv_sp[:, :, :C], kv_sp[:, :, C:]         # [Bb, S2p, C] f32

    scale2 = 1.0 / math.sqrt(ch)                          # folded (q*s)·(k*s) scale
    hsel = hsel_ref[...]                                  # [C, H]
    hselt = hselt_ref[...]                                # [H, C]

    # All-heads scores via a single block-indicator matmul (no per-head slices).
    qk_sp = q0[:, None, :] * k_sp                         # [Bb, S2p, C] f32 (VPU)
    s_sp = (jnp.dot(qk_sp.reshape(Bb * S2p, C), hsel,
                    preferred_element_type=jnp.float32)
            .reshape(Bb, S2p, H)) * scale2                # [Bb, S2p, H]
    s0 = jnp.dot(q0 * k0, hsel,
                 preferred_element_type=jnp.float32) * scale2                # [Bb, H]

    if S2p != s2_real:
        # Mask padded tokens out of the softmax (static branch; no-op if unpadded).
        tok_idx = jax.lax.broadcasted_iota(jnp.int32, (1, S2p, 1), 1)
        s_sp = jnp.where(tok_idx < s2_real, s_sp, -1e30)

    # Softmax over {mean token} ∪ spatial tokens, the mean-token column folded
    # analytically (no odd-length T = S2+1 concat).
    m = jnp.maximum(jnp.max(s_sp, axis=1), s0)            # [Bb, H]
    p0 = jnp.exp(s0 - m)                                  # [Bb, H]
    p_sp = jnp.exp(s_sp - m[:, None, :])                  # [Bb, S2p, H]
    denom = jnp.sum(p_sp, axis=1) + p0                    # [Bb, H]
    inv = 1.0 / denom                                     # exact; tiny [Bb, H]
    pn0 = p0 * inv
    pn_sp = p_sp * inv[:, None, :]

    # Broadcast per-head probabilities back to full channel width (one matmul)
    # and apply to V: a[b, c] = p0[b, h(c)]*v0[b, c] + sum_s p[b, s, h(c)]*v[b, s, c].
    pn0_bc = jnp.dot(pn0, hselt, preferred_element_type=jnp.float32)          # [Bb, C]
    pn_sp_bc = (jnp.dot(pn_sp.reshape(Bb * S2p, H), hselt,
                        preferred_element_type=jnp.float32)
                .reshape(Bb, S2p, C))                                         # [Bb, S2p, C]
    a = pn0_bc * v0 + jnp.sum(pn_sp_bc * v_sp, axis=1)                        # [Bb, C] f32

    out = jnp.dot(a.astype(cdt), wc_ref[...],
                  preferred_element_type=jnp.float32) + bc_ref[...]           # [Bb, Dp]
    o_ref[...] = out.astype(o_ref.dtype)


def _pick_block_b(B: int) -> int:
    # Prefer multiple-of-8 divisors of B capped at 16: fills MXU rows, keeps the
    # x block / [Bb*S2,2C] intermediate modest on v7x, and keeps grid >= 2 for
    # two-TensorCore sharding when B is large.  Never fall back to one giant
    # block for large B; small B is covered by its largest small divisor.
    for bb in (16, 8):
        if B % bb == 0:
            return bb
    for bb in range(min(B, 8), 0, -1):
        if B % bb == 0:
            return bb
    return 1


def attention_pool_2d(x_nchw, pos_emb, w_qkv, b_qkv, w_c, b_c, *,
                      num_heads_channels, block_b=None,
                      compute_dtype=jnp.bfloat16):
    B, C, Hh, Ww = x_nchw.shape
    S2 = Hh * Ww
    ch = num_heads_channels
    n_heads = C // ch
    Dout = w_c.shape[1]

    # Lane-dense output: pad Dout up to a multiple of 128 (sliced off at return).
    Dout_pad = ((Dout + 127) // 128) * 128
    # (8,128)-friendly token count so in-kernel flatten/unflatten is layout-free.
    S2_pad = ((S2 + 7) // 8) * 8

    # NCHW -> [B, S2, C]  (token-major; glue only).
    x_flat = jnp.transpose(x_nchw.reshape(B, C, S2), (0, 2, 1))
    if S2_pad != S2:
        x_flat = jnp.pad(x_flat, ((0, 0), (0, S2_pad - S2), (0, 0)))
    x_flat = x_flat.astype(compute_dtype)

    # Split params once in the wrapper (glue only).
    pos0 = pos_emb[0:1, :].astype(jnp.float32)                       # [1, C]
    pos_sp = pos_emb[1:, :]
    if S2_pad != S2:
        pos_sp = jnp.pad(pos_sp, ((0, S2_pad - S2), (0, 0)))
    pos_sp = pos_sp.astype(compute_dtype)                            # [S2p, C]

    w_q = w_qkv[:, :C].astype(compute_dtype)
    b_q = b_qkv[:, :C].astype(jnp.float32)
    w_kv = w_qkv[:, C:].astype(compute_dtype)
    b_kv = b_qkv[:, C:].astype(jnp.float32)

    w_c_pad = jnp.pad(w_c, ((0, 0), (0, Dout_pad - Dout))).astype(compute_dtype)
    b_c_pad = jnp.pad(b_c, ((0, 0), (0, Dout_pad - Dout))).astype(jnp.float32)

    # Per-head channel indicator matrices used to vectorize the head loop.
    head_of_c = jnp.arange(C, dtype=jnp.int32) // ch
    hsel = (head_of_c[:, None] ==
            jnp.arange(n_heads, dtype=jnp.int32)[None, :]).astype(jnp.float32)   # [C, H]
    hselt = hsel.T                                                               # [H, C]

    if block_b is None:
        block_b = _pick_block_b(B)
    assert B % block_b == 0
    grid = (B // block_b,)

    kernel = functools.partial(_attnpool_kernel, n_heads=n_heads, ch=ch,
                               embed_dim=C, s2_real=S2)

    # Constant-index operands are fetched once -> single-buffer them.
    def _const2(shape):
        return pl.BlockSpec(shape, lambda b: (0, 0), pipeline_mode=pl.Buffered(1))

    out = pl.pallas_call(
        kernel,
        out_shape=jax.ShapeDtypeStruct((B, Dout_pad), jnp.float32),
        grid=grid,
        in_specs=[
            pl.BlockSpec((block_b, S2_pad, C), lambda b: (b, 0, 0)),   # x tokens
            _const2((1, C)),                                           # pos (mean token)
            _const2((S2_pad, C)),                                      # pos (spatial)
            _const2((C, C)),                                           # w_q
            _const2((1, C)),                                           # b_q
            _const2((C, 2 * C)),                                       # w_kv
            _const2((1, 2 * C)),                                       # b_kv
            _const2((C, Dout_pad)),                                    # w_c (padded)
            _const2((1, Dout_pad)),                                    # b_c (padded)
            _const2((C, n_heads)),                                     # head indicator
            _const2((n_heads, C)),                                     # head indicator^T
        ],
        out_specs=pl.BlockSpec((block_b, Dout_pad), lambda b: (b, 0)),
        compiler_params=pltpu.CompilerParams(
            dimension_semantics=("parallel",),
            # Above v5e/v6e scoped defaults, under v7x's 64 MiB physical VMEM.
            # Raise to ~100 MiB on v5e/v6e for very large C.
            vmem_limit_bytes=48 * 1024 * 1024),
    )(x_flat, pos0, pos_sp, w_q, b_q, w_kv, b_kv, w_c_pad, b_c_pad, hsel, hselt)

    return out[:, :Dout]


def _reference(x_nchw, pos_emb, w_qkv, b_qkv, w_c, b_c, *, num_heads_channels):
    # Pure-JAX mirror of the full PyTorch forward (same weight conventions).
    B, C, H, W = x_nchw.shape
    S2 = H * W
    T = S2 + 1
    ch = num_heads_channels
    n_heads = C // ch
    xt = jnp.transpose(x_nchw.reshape(B, C, S2), (0, 2, 1))            # [B, S2, C]
    tokens = jnp.concatenate([xt.mean(axis=1, keepdims=True), xt], axis=1) + pos_emb[None]
    qkv = tokens @ w_qkv + b_qkv                                       # [B, T, 3C]
    q, k, v = qkv[..., :C], qkv[..., C:2 * C], qkv[..., 2 * C:]
    qh = q.reshape(B, T, n_heads, ch)
    kh = k.reshape(B, T, n_heads, ch)
    vh = v.reshape(B, T, n_heads, ch)
    scale = 1.0 / math.sqrt(math.sqrt(ch))
    w = jnp.einsum('bthc,bshc->bhts', qh * scale, kh * scale)
    w = jax.nn.softmax(w.astype(jnp.float32), axis=-1)
    a = jnp.einsum('bhts,bshc->bthc', w, vh).reshape(B, T, C)
    out = a @ w_c + b_c
    return out[:, 0, :]


if __name__ == "__main__":
    # Small shapes consistent with the module:
    B = 2
    spacial_dim = 4          # H = W = 4  -> 16 spatial tokens, T = 17
    embed_dim = 32           # C
    num_heads_channels = 8   # -> n_heads = 4, ch = 8
    output_dim = 16

    S2 = spacial_dim * spacial_dim
    T = S2 + 1

    key = jax.random.PRNGKey(0)
    k_x, k_pos, k_wq, k_bq, k_wc, k_bc = jax.random.split(key, 6)

    x = jax.random.normal(k_x, (B, embed_dim, spacial_dim, spacial_dim), dtype=jnp.float32)

    # positional_embedding = randn(embed_dim, T) / sqrt(embed_dim), stored transposed [T, C]
    pos_emb = (jax.random.normal(k_pos, (T, embed_dim), dtype=jnp.float32)
               / math.sqrt(embed_dim))
    # qkv_proj: Conv1d(embed_dim, 3*embed_dim, 1)  -> weight [C, 3C], bias [1, 3C]
    w_qkv = jax.random.normal(k_wq, (embed_dim, 3 * embed_dim), dtype=jnp.float32) * 0.05
    b_qkv = jax.random.normal(k_bq, (1, 3 * embed_dim), dtype=jnp.float32) * 0.05
    # c_proj: Conv1d(embed_dim, output_dim, 1)     -> weight [C, Dout], bias [1, Dout]
    w_c = jax.random.normal(k_wc, (embed_dim, output_dim), dtype=jnp.float32) * 0.05
    b_c = jax.random.normal(k_bc, (1, output_dim), dtype=jnp.float32) * 0.05

    ref = _reference(x, pos_emb, w_qkv, b_qkv, w_c, b_c,
                     num_heads_channels=num_heads_channels)

    # Default (production) path: bf16 MXU operands, f32 accumulation / softmax.
    out_bf16 = attention_pool_2d(x, pos_emb, w_qkv, b_qkv, w_c, b_c,
                                 num_heads_channels=num_heads_channels,
                                 compute_dtype=jnp.bfloat16)
    out_bf16 = jax.block_until_ready(out_bf16)
    assert out_bf16.shape == (B, output_dim)
    assert jnp.allclose(out_bf16, ref, atol=1e-2, rtol=1e-2), \
        "bf16 kernel mismatch vs pure-JAX reference"

    # f32 path for bit-closer parity with the PyTorch module.
    out_f32 = attention_pool_2d(x, pos_emb, w_qkv, b_qkv, w_c, b_c,
                                num_heads_channels=num_heads_channels,
                                compute_dtype=jnp.float32)
    out_f32 = jax.block_until_ready(out_f32)
    assert out_f32.shape == (B, output_dim)
    assert jnp.allclose(out_f32, ref, atol=2e-3, rtol=2e-3), \
        "f32 kernel mismatch vs pure-JAX reference"

    print("KERNEL_OK")
</pallas_src>

<mosaic_0001>
module attributes {stable_mosaic.version = 11 : i64} {
  func.func @_attnpool_kernel(%arg0: i32, %arg1: memref<2x16x32xbf16, #tpu.memory_space<vmem>>, %arg2: memref<1x32xf32, #tpu.memory_space<vmem>>, %arg3: memref<16x32xbf16, #tpu.memory_space<vmem>>, %arg4: memref<32x32xbf16, #tpu.memory_space<vmem>>, %arg5: memref<1x32xf32, #tpu.memory_space<vmem>>, %arg6: memref<32x64xbf16, #tpu.memory_space<vmem>>, %arg7: memref<1x64xf32, #tpu.memory_space<vmem>>, %arg8: memref<32x128xbf16, #tpu.memory_space<vmem>>, %arg9: memref<1x128xf32, #tpu.memory_space<vmem>>, %arg10: memref<32x4xf32, #tpu.memory_space<vmem>>, %arg11: memref<4x32xf32, #tpu.memory_space<vmem>>, %arg12: memref<2x128xf32, #tpu.memory_space<vmem>>) attributes {dimension_semantics = [#tpu.dimension_semantics<parallel>], iteration_bounds = array<i64: 1>, scalar_prefetch = 0 : i64, scratch_operands = 0 : i64, tpu.core_type = #tpu.core_type<tc>, window_params = [{transform_indices = @transform_0, window_bounds = array<i64: 2, 16, 32>}, {pipeline_mode = #tpu.pipeline_mode<synchronous>, transform_indices = @transform_1, window_bounds = array<i64: 1, 32>}, {pipeline_mode = #tpu.pipeline_mode<synchronous>, transform_indices = @transform_2, window_bounds = array<i64: 16, 32>}, {pipeline_mode = #tpu.pipeline_mode<synchronous>, transform_indices = @transform_3, window_bounds = array<i64: 32, 32>}, {pipeline_mode = #tpu.pipeline_mode<synchronous>, transform_indices = @transform_4, window_bounds = array<i64: 1, 32>}, {pipeline_mode = #tpu.pipeline_mode<synchronous>, transform_indices = @transform_5, window_bounds = array<i64: 32, 64>}, {pipeline_mode = #tpu.pipeline_mode<synchronous>, transform_indices = @transform_6, window_bounds = array<i64: 1, 64>}, {pipeline_mode = #tpu.pipeline_mode<synchronous>, transform_indices = @transform_7, window_bounds = array<i64: 32, 128>}, {pipeline_mode = #tpu.pipeline_mode<synchronous>, transform_indices = @transform_8, window_bounds = array<i64: 1, 128>}, {pipeline_mode = #tpu.pipeline_mode<synchronous>, transform_indices = @transform_9, window_bounds = array<i64: 32, 4>}, {pipeline_mode = #tpu.pipeline_mode<synchronous>, transform_indices = @transform_10, window_bounds = array<i64: 4, 32>}, {transform_indices = @transform_11, window_bounds = array<i64: 2, 128>}]} {
    %c0 = arith.constant 0 : index
    %c0_0 = arith.constant 0 : index
    %c0_1 = arith.constant 0 : index
    %0 = vector.load %arg1[%c0, %c0_0, %c0_1] : memref<2x16x32xbf16, #tpu.memory_space<vmem>>, vector<2x16x32xbf16>
    %1 = arith.extf %0 : vector<2x16x32xbf16> to vector<2x16x32xf32>
    %cst = arith.constant dense<0.000000e+00> : vector<2x32xf32>
    %2 = vector.multi_reduction <add>, %1, %cst [1] : vector<2x16x32xf32> to vector<2x32xf32>
    %cst_2 = arith.constant 6.250000e-02 : f32
    %3 = vector.broadcast %cst_2 : f32 to vector<2x32xf32>
    %4 = arith.mulf %2, %3 : vector<2x32xf32>
    %c0_3 = arith.constant 0 : index
    %c0_4 = arith.constant 0 : index
    %5 = vector.load %arg2[%c0_3, %c0_4] : memref<1x32xf32, #tpu.memory_space<vmem>>, vector<1x32xf32>
    %6 = vector.broadcast %5 : vector<1x32xf32> to vector<2x32xf32>
    %7 = arith.addf %4, %6 : vector<2x32xf32>
    %8 = arith.truncf %7 : vector<2x32xf32> to vector<2x32xbf16>
    %c0_5 = arith.constant 0 : index
    %c0_6 = arith.constant 0 : index
    %9 = vector.load %arg3[%c0_5, %c0_6] : memref<16x32xbf16, #tpu.memory_space<vmem>>, vector<16x32xbf16>
    %10 = vector.shape_cast %9 : vector<16x32xbf16> to vector<1x16x32xbf16>
    %11 = vector.broadcast %10 : vector<1x16x32xbf16> to vector<2x16x32xbf16>
    %12 = arith.addf %0, %11 : vector<2x16x32xbf16>
    %c0_7 = arith.constant 0 : index
    %c0_8 = arith.constant 0 : index
    %13 = vector.load %arg4[%c0_7, %c0_8] : memref<32x32xbf16, #tpu.memory_space<vmem>>, vector<32x32xbf16>
    %cst_9 = arith.constant dense<0.000000e+00> : vector<2x32xf32>
    %14 = tpu.matmul %8, %13, %cst_9 {dimension_numbers = #tpu.dot_dimension_numbers<[1], [0], [0], [1], [0, 0, 1, 1], [], []>} : vector<2x32xbf16>, vector<32x32xbf16>, vector<2x32xf32> -> vector<2x32xf32>
    %c0_10 = arith.constant 0 : index
    %c0_11 = arith.constant 0 : index
    %15 = vector.load %arg5[%c0_10, %c0_11] : memref<1x32xf32, #tpu.memory_space<vmem>>, vector<1x32xf32>
    %16 = vector.broadcast %15 : vector<1x32xf32> to vector<2x32xf32>
    %17 = arith.addf %14, %16 : vector<2x32xf32>
    %c0_12 = arith.constant 0 : index
    %c0_13 = arith.constant 0 : index
    %18 = vector.load %arg6[%c0_12, %c0_13] : memref<32x64xbf16, #tpu.memory_space<vmem>>, vector<32x64xbf16>
    %cst_14 = arith.constant dense<0.000000e+00> : vector<2x64xf32>
    %19 = tpu.matmul %8, %18, %cst_14 {dimension_numbers = #tpu.dot_dimension_numbers<[1], [0], [0], [1], [0, 0, 1, 1], [], []>} : vector<2x32xbf16>, vector<32x64xbf16>, vector<2x64xf32> -> vector<2x64xf32>
    %c0_15 = arith.constant 0 : index
    %c0_16 = arith.constant 0 : index
    %20 = vector.load %arg7[%c0_15, %c0_16] : memref<1x64xf32, #tpu.memory_space<vmem>>, vector<1x64xf32>
    %21 = vector.broadcast %20 : vector<1x64xf32> to vector<2x64xf32>
    %22 = arith.addf %19, %21 : vector<2x64xf32>
    %23 = vector.shape_cast %12 : vector<2x16x32xbf16> to vector<32x32xbf16>
    %c0_17 = arith.constant 0 : index
    %c0_18 = arith.constant 0 : index
    %24 = vector.load %arg6[%c0_17, %c0_18] : memref<32x64xbf16, #tpu.memory_space<vmem>>, vector<32x64xbf16>
    %cst_19 = arith.constant dense<0.000000e+00> : vector<32x64xf32>
    %25 = tpu.matmul %23, %24, %cst_19 {dimension_numbers = #tpu.dot_dimension_numbers<[1], [0], [0], [1], [0, 0, 1, 1], [], []>} : vector<32x32xbf16>, vector<32x64xbf16>, vector<32x64xf32> -> vector<32x64xf32>
    %c0_20 = arith.constant 0 : index
    %c0_21 = arith.constant 0 : index
    %26 = vector.load %arg7[%c0_20, %c0_21] : memref<1x64xf32, #tpu.memory_space<vmem>>, vector<1x64xf32>
    %27 = vector.broadcast %26 : vector<1x64xf32> to vector<32x64xf32>
    %28 = arith.addf %25, %27 : vector<32x64xf32>
    %29 = vector.shape_cast %28 : vector<32x64xf32> to vector<2x16x64xf32>
    %30 = vector.extract_strided_slice %22 {offsets = [0, 0], sizes = [2, 32], strides = [1, 1]} : vector<2x64xf32> to vector<2x32xf32>
    %31 = vector.extract_strided_slice %22 {offsets = [0, 32], sizes = [2, 32], strides = [1, 1]} : vector<2x64xf32> to vector<2x32xf32>
    %32 = vector.extract_strided_slice %29 {offsets = [0, 0, 0], sizes = [2, 16, 32], strides = [1, 1, 1]} : vector<2x16x64xf32> to vector<2x16x32xf32>
    %33 = vector.extract_strided_slice %29 {offsets = [0, 0, 32], sizes = [2, 16, 32], strides = [1, 1, 1]} : vector<2x16x64xf32> to vector<2x16x32xf32>
    %c0_22 = arith.constant 0 : index
    %c0_23 = arith.constant 0 : index
    %34 = vector.load %arg10[%c0_22, %c0_23] : memref<32x4xf32, #tpu.memory_space<vmem>>, vector<32x4xf32>
    %c0_24 = arith.constant 0 : index
    %c0_25 = arith.constant 0 : index
    %35 = vector.load %arg11[%c0_24, %c0_25] : memref<4x32xf32, #tpu.memory_space<vmem>>, vector<4x32xf32>
    %36 = vector.shape_cast %17 : vector<2x32xf32> to vector<2x1x32xf32>
    %37 = vector.broadcast %36 : vector<2x1x32xf32> to vector<2x16x32xf32>
    %38 = arith.mulf %37, %32 : vector<2x16x32xf32>
    %39 = vector.shape_cast %38 : vector<2x16x32xf32> to vector<32x32xf32>
    %cst_26 = arith.constant dense<0.000000e+00> : vector<32x4xf32>
    %40 = tpu.matmul %39, %34, %cst_26 {dimension_numbers = #tpu.dot_dimension_numbers<[1], [0], [0], [1], [0, 0, 1, 1], [], []>} : vector<32x32xf32>, vector<32x4xf32>, vector<32x4xf32> -> vector<32x4xf32>
    %41 = vector.shape_cast %40 : vector<32x4xf32> to vector<2x16x4xf32>
    %cst_27 = arith.constant 0.353553385 : f32
    %42 = vector.broadcast %cst_27 : f32 to vector<2x16x4xf32>
    %43 = arith.mulf %41, %42 : vector<2x16x4xf32>
    %44 = arith.mulf %17, %30 : vector<2x32xf32>
    %cst_28 = arith.constant dense<0.000000e+00> : vector<2x4xf32>
    %45 = tpu.matmul %44, %34, %cst_28 {dimension_numbers = #tpu.dot_dimension_numbers<[1], [0], [0], [1], [0, 0, 1, 1], [], []>} : vector<2x32xf32>, vector<32x4xf32>, vector<2x4xf32> -> vector<2x4xf32>
    %cst_29 = arith.constant 0.353553385 : f32
    %46 = vector.broadcast %cst_29 : f32 to vector<2x4xf32>
    %47 = arith.mulf %45, %46 : vector<2x4xf32>
    %cst_30 = arith.constant dense<0xFF800000> : vector<2x4xf32>
    %48 = vector.multi_reduction <maximumf>, %43, %cst_30 [1] : vector<2x16x4xf32> to vector<2x4xf32>
    %49 = arith.maximumf %48, %47 : vector<2x4xf32>
    %50 = arith.subf %47, %49 : vector<2x4xf32>
    %51 = math.exp %50 : vector<2x4xf32>
    %52 = vector.shape_cast %49 : vector<2x4xf32> to vector<2x1x4xf32>
    %53 = vector.broadcast %52 : vector<2x1x4xf32> to vector<2x16x4xf32>
    %54 = arith.subf %43, %53 : vector<2x16x4xf32>
    %55 = math.exp %54 : vector<2x16x4xf32>
    %cst_31 = arith.constant dense<0.000000e+00> : vector<2x4xf32>
    %56 = vector.multi_reduction <add>, %55, %cst_31 [1] : vector<2x16x4xf32> to vector<2x4xf32>
    %57 = arith.addf %56, %51 : vector<2x4xf32>
    %cst_32 = arith.constant 1.000000e+00 : f32
    %58 = vector.broadcast %cst_32 : f32 to vector<2x4xf32>
    %59 = arith.divf %58, %57 : vector<2x4xf32>
    %60 = arith.mulf %51, %59 : vector<2x4xf32>
    %61 = vector.shape_cast %59 : vector<2x4xf32> to vector<2x1x4xf32>
    %62 = vector.broadcast %61 : vector<2x1x4xf32> to vector<2x16x4xf32>
    %63 = arith.mulf %55, %62 : vector<2x16x4xf32>
    %cst_33 = arith.constant dense<0.000000e+00> : vector<2x32xf32>
    %64 = tpu.matmul %60, %35, %cst_33 {dimension_numbers = #tpu.dot_dimension_numbers<[1], [0], [0], [1], [0, 0, 1, 1], [], []>} : vector<2x4xf32>, vector<4x32xf32>, vector<2x32xf32> -> vector<2x32xf32>
    %65 = vector.shape_cast %63 : vector<2x16x4xf32> to vector<32x4xf32>
    %cst_34 = arith.constant dense<0.000000e+00> : vector<32x32xf32>
    %66 = tpu.matmul %65, %35, %cst_34 {dimension_numbers = #tpu.dot_dimension_numbers<[1], [0], [0], [1], [0, 0, 1, 1], [], []>} : vector<32x4xf32>, vector<4x32xf32>, vector<32x32xf32> -> vector<32x32xf32>
    %67 = vector.shape_cast %66 : vector<32x32xf32> to vector<2x16x32xf32>
    %68 = arith.mulf %64, %31 : vector<2x32xf32>
    %69 = arith.mulf %67, %33 : vector<2x16x32xf32>
    %cst_35 = arith.constant dense<0.000000e+00> : vector<2x32xf32>
    %70 = vector.multi_reduction <add>, %69, %cst_35 [1] : vector<2x16x32xf32> to vector<2x32xf32>
    %71 = arith.addf %68, %70 : vector<2x32xf32>
    %72 = arith.truncf %71 : vector<2x32xf32> to vector<2x32xbf16>
    %c0_36 = arith.constant 0 : index
    %c0_37 = arith.constant 0 : index
    %73 = vector.load %arg8[%c0_36, %c0_37] : memref<32x128xbf16, #tpu.memory_space<vmem>>, vector<32x128xbf16>
    %cst_38 = arith.constant dense<0.000000e+00> : vector<2x128xf32>
    %74 = tpu.matmul %72, %73, %cst_38 {dimension_numbers = #tpu.dot_dimension_numbers<[1], [0], [0], [1], [0, 0, 1, 1], [], []>} : vector<2x32xbf16>, vector<32x128xbf16>, vector<2x128xf32> -> vector<2x128xf32>
    %c0_39 = arith.constant 0 : index
    %c0_40 = arith.constant 0 : index
    %75 = vector.load %arg9[%c0_39, %c0_40] : memref<1x128xf32, #tpu.memory_space<vmem>>, vector<1x128xf32>
    %76 = vector.broadcast %75 : vector<1x128xf32> to vector<2x128xf32>
    %77 = arith.addf %74, %76 : vector<2x128xf32>
    %c0_41 = arith.constant 0 : index
    %c0_42 = arith.constant 0 : index
    %78 = vector.load %arg12[%c0_41, %c0_42] : memref<2x128xf32, #tpu.memory_space<vmem>>, vector<2x128xf32>
    tpu.vector_store %arg12[%c0_41, %c0_42], %77 {strides = array<i32>} : memref<2x128xf32, #tpu.memory_space<vmem>>, vector<2x128xf32>,
    return
  }
  func.func @transform_0(%arg0: i32) -> (i32, i32, i32) {
    %c0_i32 = arith.constant 0 : i32
    %c0_i32_0 = arith.constant 0 : i32
    %c0_i32_1 = arith.constant 0 : i32
    return %arg0, %c0_i32, %c0_i32_0 : i32, i32, i32
  }
  func.func @transform_1(%arg0: i32) -> (i32, i32) {
    %c0_i32 = arith.constant 0 : i32
    %c0_i32_0 = arith.constant 0 : i32
    %c0_i32_1 = arith.constant 0 : i32
    return %c0_i32, %c0_i32_0 : i32, i32
  }
  func.func @transform_2(%arg0: i32) -> (i32, i32) {
    %c0_i32 = arith.constant 0 : i32
    %c0_i32_0 = arith.constant 0 : i32
    %c0_i32_1 = arith.constant 0 : i32
    return %c0_i32, %c0_i32_0 : i32, i32
  }
  func.func @transform_3(%arg0: i32) -> (i32, i32) {
    %c0_i32 = arith.constant 0 : i32
    %c0_i32_0 = arith.constant 0 : i32
    %c0_i32_1 = arith.constant 0 : i32
    return %c0_i32, %c0_i32_0 : i32, i32
  }
  func.func @transform_4(%arg0: i32) -> (i32, i32) {
    %c0_i32 = arith.constant 0 : i32
    %c0_i32_0 = arith.constant 0 : i32
    %c0_i32_1 = arith.constant 0 : i32
    return %c0_i32, %c0_i32_0 : i32, i32
  }
  func.func @transform_5(%arg0: i32) -> (i32, i32) {
    %c0_i32 = arith.constant 0 : i32
    %c0_i32_0 = arith.constant 0 : i32
    %c0_i32_1 = arith.constant 0 : i32
    return %c0_i32, %c0_i32_0 : i32, i32
  }
  func.func @transform_6(%arg0: i32) -> (i32, i32) {
    %c0_i32 = arith.constant 0 : i32
    %c0_i32_0 = arith.constant 0 : i32
    %c0_i32_1 = arith.constant 0 : i32
    return %c0_i32, %c0_i32_0 : i32, i32
  }
  func.func @transform_7(%arg0: i32) -> (i32, i32) {
    %c0_i32 = arith.constant 0 : i32
    %c0_i32_0 = arith.constant 0 : i32
    %c0_i32_1 = arith.constant 0 : i32
    return %c0_i32, %c0_i32_0 : i32, i32
  }
  func.func @transform_8(%arg0: i32) -> (i32, i32) {
    %c0_i32 = arith.constant 0 : i32
    %c0_i32_0 = arith.constant 0 : i32
    %c0_i32_1 = arith.constant 0 : i32
    return %c0_i32, %c0_i32_0 : i32, i32
  }
  func.func @transform_9(%arg0: i32) -> (i32, i32) {
    %c0_i32 = arith.constant 0 : i32
    %c0_i32_0 = arith.constant 0 : i32
    %c0_i32_1 = arith.constant 0 : i32
    return %c0_i32, %c0_i32_0 : i32, i32
  }
  func.func @transform_10(%arg0: i32) -> (i32, i32) {
    %c0_i32 = arith.constant 0 : i32
    %c0_i32_0 = arith.constant 0 : i32
    %c0_i32_1 = arith.constant 0 : i32
    return %c0_i32, %c0_i32_0 : i32, i32
  }
  func.func @transform_11(%arg0: i32) -> (i32, i32) {
    %c0_i32 = arith.constant 0 : i32
    %c0_i32_0 = arith.constant 0 : i32
    return %arg0, %c0_i32 : i32, i32
  }
}

</mosaic_0001>

<llo_original>
// kernel: tpu_custom_call.1
$region0: #{tpu_custom_call.1}
  #allocation0 [shape = 'u32[]', space=smem, size = 0x4, offset = 0x4, fixed_abs, tag = 'smem constant byte address 0x4 - core index']
  #allocation1 [shape = 'u32[72,128]{1,0:T(1,128)}', space=vmem, size = 0x9000, scoped, tag = 'internal scratch']
  %s0 = inlined_call_operand.vmem [shape: bf16[2,16,32], index: 0, kind: input, shape index: {}]
  %s1 = inlined_call_operand.hbm [shape: f32[1,32], index: 1, kind: input, shape index: {}]
  %s2 = inlined_call_operand.hbm [shape: bf16[16,32], index: 2, kind: input, shape index: {}]
  %s3 = inlined_call_operand.vmem [shape: bf16[32,32], index: 3, kind: input, shape index: {}]
  %s4 = inlined_call_operand.vmem [shape: f32[1,32], index: 4, kind: input, shape index: {}]
  %s5 = inlined_call_operand.hbm [shape: bf16[32,64], index: 5, kind: input, shape index: {}]
  %s6 = inlined_call_operand.vmem [shape: f32[1,64], index: 6, kind: input, shape index: {}]
  %s7 = inlined_call_operand.hbm [shape: bf16[32,128], index: 7, kind: input, shape index: {}]
  %s8 = inlined_call_operand.vmem [shape: f32[1,128], index: 8, kind: input, shape index: {}]
  %s9 = inlined_call_operand.vmem [shape: f32[32,4], index: 9, kind: input, shape index: {}]
  %s10 = inlined_call_operand.vmem [shape: f32[4,32], index: 10, kind: input, shape index: {}]
  %s11 = inlined_call_operand.hbm [shape: f32[2,128], index: 11, kind: output, shape index: {}]
  %s12 = sld [smem:[#allocation0]]
  $region70: #{tpu_custom_call.1} parent=0
    _
  %s14 = ssub.s32 1, %s12
  %s15 = scalar_select 0, %s14, %s12
  $region1: #{tpu_custom_call.1} parent=0
    #allocation2 [shape = 'u8[512]{0}', space=vmem, size = 0x400, scoped, tag = 'input window, operand 1, single buffered']
    #allocation3 [shape = 's32[1]{0}', space=sflag, size = 0x4, scoped, tag = 'scoped memory for tpu_custom_call.1']
    #allocation4 [shape = 's32[1]{0}', space=sflag, size = 0x4, scoped, tag = 'scoped memory for tpu_custom_call.1']
    #allocation5 [shape = 'u8[4096]{0}', space=vmem, size = 0x1000, scoped, tag = 'input window, operand 2, single buffered']
    #allocation6 [shape = 's32[1]{0}', space=sflag, size = 0x4, scoped, tag = 'scoped memory for tpu_custom_call.1']
    #allocation7 [shape = 'u8[8192]{0}', space=vmem, size = 0x2000, scoped, tag = 'input window, operand 5, single buffered']
    #allocation8 [shape = 'u8[8192]{0}', space=vmem, size = 0x2000, scoped, tag = 'input window, operand 7, single buffered']
    #allocation9 [shape = 's32[1]{0}', space=sflag, size = 0x4, scoped, tag = 'scoped memory for tpu_custom_call.1']
    #allocation10 [shape = 'u8[1024]{0}', space=vmem, size = 0x400, scoped, tag = 'output window, operand 0, single buffered']
    %16 = vsyncpa [#allocation3], 0
    %17 = vsyncpa [#allocation6], 0
    %18 = vsyncpa [#allocation9], 0
    %19 = vsyncpa [#allocation4], 0
    // Predicated region
    $region2: #{tpu_custom_call.1} parent=1 // pred_check
      _
    $region3: #{tpu_custom_call.1} parent=1 // pred_check_branch
      %21 = sbr.rel (0) target = $region5
    $region4: #{tpu_custom_call.1} parent=1 // pred_region
      _
    $region5: #{tpu_custom_call.1} parent=1 // pred_fallthru
      _
    // Predicated region
    $region6: #{tpu_custom_call.1} parent=1 // pred_check
      _
    $region7: #{tpu_custom_call.1} parent=1 // pred_check_branch
      %23 = sbr.rel (0) target = $region9
    $region8: #{tpu_custom_call.1} parent=1 // pred_region
      %25 = vsyncadd [#allocation3], 0
      %s27 = sshll.u32 %s1, 4
      %s28 = int_to_ptr.hbm [resolvable:$true] %s27
      %s29 = sshll.u32 [#allocation2], 4
      %s30 = int_to_ptr.vmem [resolvable:$true] %s29
      %32 = dma.hbm_to_vmem [thread:$0]  %s28, 16, %s30, [#allocation3]
    $region9: #{tpu_custom_call.1} parent=1 // pred_fallthru
      _
    // Predicated region
    $region10: #{tpu_custom_call.1} parent=1 // pred_check
      _
    $region11: #{tpu_custom_call.1} parent=1 // pred_check_branch
      %34 = sbr.rel (0) target = $region13
    $region12: #{tpu_custom_call.1} parent=1 // pred_region
      %36 = vsyncadd [#allocation6], 0
      %s37 = sshll.u32 %s2, 4
      %s38 = int_to_ptr.hbm [resolvable:$true] %s37
      %s39 = sshll.u32 [#allocation5], 4
      %s40 = int_to_ptr.vmem [resolvable:$true] %s39
      %45 = dma.hbm_to_vmem [thread:$0]  %s38, 128, %s40, [#allocation6], 64, 64, 4
    $region13: #{tpu_custom_call.1} parent=1 // pred_fallthru
      _
    // Predicated region
    $region14: #{tpu_custom_call.1} parent=1 // pred_check
      _
    $region15: #{tpu_custom_call.1} parent=1 // pred_check_branch
      %47 = sbr.rel (0) target = $region17
    $region16: #{tpu_custom_call.1} parent=1 // pred_region
      _
    $region17: #{tpu_custom_call.1} parent=1 // pred_fallthru
      _
    // Predicated region
    $region18: #{tpu_custom_call.1} parent=1 // pred_check
      _
    $region19: #{tpu_custom_call.1} parent=1 // pred_check_branch
      %49 = sbr.rel (0) target = $region21
    $region20: #{tpu_custom_call.1} parent=1 // pred_region
      _
    $region21: #{tpu_custom_call.1} parent=1 // pred_fallthru
      _
    // Predicated region
    $region22: #{tpu_custom_call.1} parent=1 // pred_check
      _
    $region23: #{tpu_custom_call.1} parent=1 // pred_check_branch
      %51 = sbr.rel (0) target = $region25
    $region24: #{tpu_custom_call.1} parent=1 // pred_region
      %53 = vsyncadd [#allocation6], 0
      %s54 = sshll.u32 %s5, 4
      %s55 = int_to_ptr.hbm [resolvable:$true] %s54
      %s56 = sshll.u32 [#allocation7], 4
      %s57 = int_to_ptr.vmem [resolvable:$true] %s56
      %62 = dma.hbm_to_vmem [thread:$0]  %s55, 256, %s57, [#allocation6], 64, 64, 4
    $region25: #{tpu_custom_call.1} parent=1 // pred_fallthru
      _
    // Predicated region
    $region26: #{tpu_custom_call.1} parent=1 // pred_check
      _
    $region27: #{tpu_custom_call.1} parent=1 // pred_check_branch
      %64 = sbr.rel (0) target = $region29
    $region28: #{tpu_custom_call.1} parent=1 // pred_region
      _
    $region29: #{tpu_custom_call.1} parent=1 // pred_fallthru
      _
    // Predicated region
    $region30: #{tpu_custom_call.1} parent=1 // pred_check
      _
    $region31: #{tpu_custom_call.1} parent=1 // pred_check_branch
      %66 = sbr.rel (0) target = $region33
    $region32: #{tpu_custom_call.1} parent=1 // pred_region
      %68 = vsyncadd [#allocation9], 0
      %s69 = sshll.u32 %s7, 4
      %s70 = int_to_ptr.hbm [resolvable:$true] %s69
      %s71 = sshll.u32 [#allocation8], 4
      %s72 = int_to_ptr.vmem [resolvable:$true] %s71
      %77 = dma.hbm_to_vmem [thread:$0]  %s70, 256, %s72, [#allocation9], 64, 64, 4
    $region33: #{tpu_custom_call.1} parent=1 // pred_fallthru
      _
    // Predicated region
    $region34: #{tpu_custom_call.1} parent=1 // pred_check
      _
    $region35: #{tpu_custom_call.1} parent=1 // pred_check_branch
      %79 = sbr.rel (0) target = $region37
    $region36: #{tpu_custom_call.1} parent=1 // pred_region
      _
    $region37: #{tpu_custom_call.1} parent=1 // pred_fallthru
      _
    // Predicated region
    $region38: #{tpu_custom_call.1} parent=1 // pred_check
      _
    $region39: #{tpu_custom_call.1} parent=1 // pred_check_branch
      %81 = sbr.rel (0) target = $region41
    $region40: #{tpu_custom_call.1} parent=1 // pred_region
      _
    $region41: #{tpu_custom_call.1} parent=1 // pred_fallthru
      _
    // Predicated region
    $region42: #{tpu_custom_call.1} parent=1 // pred_check
      _
    $region43: #{tpu_custom_call.1} parent=1 // pred_check_branch
      %83 = sbr.rel (0) target = $region45
    $region44: #{tpu_custom_call.1} parent=1 // pred_region
      _
    $region45: #{tpu_custom_call.1} parent=1 // pred_fallthru
      _
    // Predicated region
    $region46: #{tpu_custom_call.1} parent=1 // pred_check
      _
    $region47: #{tpu_custom_call.1} parent=1 // pred_check_branch
      %85 = sbr.rel (0) target = $region49
    $region48: #{tpu_custom_call.1} parent=1 // pred_region
      %87 = dma.done [#allocation3], 16
    $region49: #{tpu_custom_call.1} parent=1 // pred_fallthru
      _
    // Predicated region
    $region50: #{tpu_custom_call.1} parent=1 // pred_check
      _
    $region51: #{tpu_custom_call.1} parent=1 // pred_check_branch
      %89 = sbr.rel (0) target = $region53
    $region52: #{tpu_custom_call.1} parent=1 // pred_region
      %91 = dma.done [#allocation6], 128
    $region53: #{tpu_custom_call.1} parent=1 // pred_fallthru
      _
    // Predicated region
    $region54: #{tpu_custom_call.1} parent=1 // pred_check
      _
    $region55: #{tpu_custom_call.1} parent=1 // pred_check_branch
      %93 = sbr.rel (0) target = $region57
    $region56: #{tpu_custom_call.1} parent=1 // pred_region
      %95 = dma.done [#allocation6], 256
    $region57: #{tpu_custom_call.1} parent=1 // pred_fallthru
      _
    // Predicated region
    $region58: #{tpu_custom_call.1} parent=1 // pred_check
      _
    $region59: #{tpu_custom_call.1} parent=1 // pred_check_branch
      %97 = sbr.rel (0) target = $region61
    $region60: #{tpu_custom_call.1} parent=1 // pred_region
      %99 = dma.done [#allocation9], 256
    $region61: #{tpu_custom_call.1} parent=1 // pred_fallthru
      _
    %v101 = vld [vmem:[%s0] sm:$0xf]
    %v102 = vld [vmem:[%s0 + $0x4] sm:$0xf]
    %v103 = vld [vmem:[%s0 + $0x8] sm:$0xf]
    %v104 = vld [vmem:[%s0 + $0xc] sm:$0xf]
    %v105 = vunpack.c.l.bf16 %v101
    %v106 = vunpack.c.l.bf16 %v102
    %v107 = vunpack.c.l.bf16 %v103
    %v108 = vunpack.c.l.bf16 %v104
    %vm109 = vcmask 261120
    %v110 = vsel %vm109, %v105, 0.0
    %v111 = vsel %vm109, %v106, 0.0
    %v112 = vadd.f32 %v110, %v111
    %v113 = vrot.slane %v112, 4
    %v114 = vadd.f32 %v112, %v113
    %v115 = vrot.slane %v114, 2
    %v116 = vadd.f32 %v114, %v115
    %v117 = vrot.slane %v116, 1
    %v118 = vadd.f32 %v116, %v117
    %v119 = vsel %vm109, %v107, 0.0
    %v120 = vsel %vm109, %v108, 0.0
    %v121 = vadd.f32 %v119, %v120
    %v122 = vrot.slane %v121, 4
    %v123 = vadd.f32 %v121, %v122
    %v124 = vrot.slane %v123, 2
    %v125 = vadd.f32 %v123, %v124
    %v126 = vrot.slane %v125, 1
    %v127 = vadd.f32 %v125, %v126
    %v128 = vmul.f32 %v118, 0.0625
    %v129 = vmul.f32 %v127, 0.0625
    %v130 = vld [vmem:[#allocation2] sm:$0x1]
    %v132 = vperm.slane %v130, 0
    %v134 = vadd.f32 %v128, %v132
    %v135 = vadd.f32 %v129, %v132
    %v136 = vpack.c.bf16 %v134, %v134
    %v137 = vpack.c.bf16 %v135, %v135
    %v138 = vld [vmem:[#allocation5] sm:$0xf]
    %v139 = vld [vmem:[#allocation5 + $0x4] sm:$0xf]
    %v140 = vunpack.c.l.bf16 %v138
    %v141 = vunpack.c.l.bf16 %v139
    %v142 = vadd.f32 %v105, %v140
    %v143 = vadd.f32 %v106, %v141
    %v144 = vadd.f32 %v107, %v140
    %v145 = vadd.f32 %v108, %v141
    %v146 = vpack.c.bf16 %v142, %v142
    %v147 = vpack.c.bf16 %v143, %v143
    %v148 = vpack.c.bf16 %v144, %v144
    %v149 = vpack.c.bf16 %v145, %v145
    %v150 = vld [vmem:[%s3] sm:$0xf]
    %v151 = vld [vmem:[%s3 + $0x4] sm:$0xf]
    %v152 = vld [vmem:[%s3 + $0x8] sm:$0xf]
    %v153 = vld [vmem:[%s3 + $0xc] sm:$0xf]
    %v154 = vld [vmem:[%s4] sm:$0x1]
    %v156 = vperm.slane %v154, 0
    %v160 = vunpack.c.l.b16 %v136
    %v161 = vunpack.c.l.b16 %v137
    %v162 = vrot.slane %v161, 7
    %vm163 = vcmask 1041409
    %v164 = vsel %vm163, %v162, %v160
    %v165 = vpack.c.b16 %v164, %v164
    %v170 = vunpack.c.l.b16 %v150
    %v171 = vunpack.c.l.b16 %v151
    %v172 = vunpack.c.l.b16 %v152
    %v173 = vunpack.c.l.b16 %v153
    %v174 = vpack.c.b16 %v171, %v170
    %v175 = vpack.c.b16 %v173, %v172
    %v179 = vsel %vm109, %v165, 0
    %181 = vmatpush.bf16.msra.mxu0 0
    %182 = vmatpush.bf16.msra.mxu0 0
    %183 = vmatpush.bf16.msra.mxu0 0
    %184 = vmatpush.bf16.msra.mxu0 0
    %185 = vmatpush.bf16.msra.mxu0 0
    %186 = vmatpush.bf16.msra.mxu0 0
    %187 = vmatpush.bf16.msra.mxu0 %v175
    %188 = vmatpush.bf16.msra.mxu0 %v174
    %189 = vmatmul.bf16.gmra.mxu0 %v179
    %v190 = vpop.f32.mrf.mxu0
    %v191 = vadd.f32 %v156, %v190
    %v192 = vpop.f32.mrf.mxu0
    %193 = vdwg.mxu0
    %v194 = vld [vmem:[#allocation7] sm:$0xf]
    %v195 = vld [vmem:[#allocation7 + $0x4] sm:$0xf]
    %v196 = vld [vmem:[#allocation7 + $0x8] sm:$0xf]
    %v197 = vld [vmem:[#allocation7 + $0xc] sm:$0xf]
    %v198 = vld [vmem:[%s6] sm:$0x1]
    %v200 = vperm.slane %v198, 0
    %v206 = vunpack.c.l.b16 %v194
    %v207 = vunpack.c.l.b16 %v195
    %v208 = vunpack.c.l.b16 %v196
    %v209 = vunpack.c.l.b16 %v197
    %v210 = vpack.c.b16 %v207, %v206
    %v211 = vpack.c.b16 %v209, %v208
    %214 = vmatpush.bf16.msra.mxu0 0
    %215 = vmatpush.bf16.msra.mxu0 0
    %216 = vmatpush.bf16.msra.mxu0 0
    %217 = vmatpush.bf16.msra.mxu0 0
    %218 = vmatpush.bf16.msra.mxu0 0
    %219 = vmatpush.bf16.msra.mxu0 0
    %220 = vmatpush.bf16.msra.mxu0 %v211
    %221 = vmatpush.bf16.msra.mxu0 %v210
    %222 = vmatmul.bf16.gmra.mxu0 %v179
    %v223 = vpop.f32.mrf.mxu0
    %v224 = vadd.f32 %v200, %v223
    %v225 = vpop.f32.mrf.mxu0
    %226 = vdwg.mxu0
    %v231 = vunpack.c.l.b16 %v146
    %v232 = vunpack.c.l.b16 %v147
    %v233 = vunpack.c.l.b16 %v148
    %v234 = vunpack.c.l.b16 %v149
    %v235 = vpack.c.b16 %v232, %v231
    %v236 = vpack.c.b16 %v234, %v233
    %v238 = vsel %vm109, %v235, 0
    %v241 = vsel %vm109, %v236, 0
    %243 = vmatpush.bf16.msra.mxu0 0
    %244 = vmatpush.bf16.msra.mxu0 0
    %245 = vmatpush.bf16.msra.mxu0 0
    %246 = vmatpush.bf16.msra.mxu0 0
    %247 = vmatpush.bf16.msra.mxu0 0
    %248 = vmatpush.bf16.msra.mxu0 0
    %249 = vmatpush.bf16.msra.mxu0 %v211
    %250 = vmatpush.bf16.msra.mxu0 %v210
    %251 = vmatmul.bf16.gmra.mxu0 %v238
    %v252 = vpop.f32.mrf.mxu0
    %v253 = vadd.f32 %v200, %v252
    %v254 = vpop.f32.mrf.mxu0
    %v255 = vadd.f32 %v200, %v254
    %256 = vmatmul.bf16.gmra.mxu0 %v241
    %v257 = vpop.f32.mrf.mxu0
    %v258 = vadd.f32 %v200, %v257
    %v259 = vpop.f32.mrf.mxu0
    %v260 = vadd.f32 %v200, %v259
    %261 = vdwg.mxu0
    %v262 = vld [vmem:[%s9] sm:$0xff]
    %v263 = vld [vmem:[%s9 + $0x8] sm:$0xff]
    %v264 = vld [vmem:[%s9 + $0x10] sm:$0xff]
    %v265 = vld [vmem:[%s9 + $0x18] sm:$0xff]
    %v266 = vld [vmem:[%s10] sm:$0xf]
    %v268 = vrot.slane %v191, 1
    %v269 = vperm.slane %v191, 0
    %v270 = vperm.slane %v268, 0
    %v273 = vmul.f32 %v269, %v253
    %v274 = vmul.f32 %v269, %v255
    %v275 = vmul.f32 %v270, %v258
    %v276 = vmul.f32 %v270, %v260
    %v278 = vsel %vm109, %v273, 0
    %v281 = vsel %vm109, %v274, 0
    %v284 = vsel %vm109, %v275, 0
    %v287 = vsel %vm109, %v276, 0
    %289 = vmatpush.msra.mxu0 0.0
    %290 = vmatpush.msra.mxu0 0.0
    %291 = vmatpush.msra.mxu0 0.0
    %292 = vmatpush.msra.mxu0 0.0
    %293 = vmatpush.msra.mxu0 0.0
    %294 = vmatpush.msra.mxu0 0.0
    %295 = vmatpush.msra.mxu0 0.0
    %296 = vmatpush.msra.mxu0 0.0
    %297 = vmatpush.msra.mxu0 0.0
    %298 = vmatpush.msra.mxu0 0.0
    %299 = vmatpush.msra.mxu0 0.0
    %300 = vmatpush.msra.mxu0 0.0
    %301 = vmatpush.msra.mxu0 %v265
    %302 = vmatpush.msra.mxu0 %v264
    %303 = vmatpush.msra.mxu0 %v263
    %304 = vmatpush.msra.mxu0 %v262
    %305 = vmatmul.f32.gmra.mxu0 %v278
    %v306 = vpop.f32.mrf.mxu0
    %v307 = vadd.f32 0.0, %v306
    %308 = vmatmul.f32.gmra.mxu0 %v281
    %v309 = vpop.f32.mrf.mxu0
    %v310 = vadd.f32 0.0, %v309
    %311 = vmatmul.f32.gmra.mxu0 %v284
    %v312 = vpop.f32.mrf.mxu0
    %v313 = vadd.f32 0.0, %v312
    %314 = vmatmul.f32.gmra.mxu0 %v287
    %v315 = vpop.f32.mrf.mxu0
    %v316 = vadd.f32 0.0, %v315
    %317 = vdwg.mxu0
    %v318 = vmul.f32 %v307, 0.35355338
    %v319 = vmul.f32 %v310, 0.35355338
    %v320 = vmul.f32 %v313, 0.35355338
    %v321 = vmul.f32 %v316, 0.35355338
    %v322 = vmul.f32 %v191, %v224
    %v324 = vsel %vm109, %v322, 0
    %326 = vmatpush.msra.mxu0 0.0
    %327 = vmatpush.msra.mxu0 0.0
    %328 = vmatpush.msra.mxu0 0.0
    %329 = vmatpush.msra.mxu0 0.0
    %330 = vmatpush.msra.mxu0 0.0
    %331 = vmatpush.msra.mxu0 0.0
    %332 = vmatpush.msra.mxu0 0.0
    %333 = vmatpush.msra.mxu0 0.0
    %334 = vmatpush.msra.mxu0 0.0
    %335 = vmatpush.msra.mxu0 0.0
    %336 = vmatpush.msra.mxu0 0.0
    %337 = vmatpush.msra.mxu0 0.0
    %338 = vmatpush.msra.mxu0 %v265
    %339 = vmatpush.msra.mxu0 %v264
    %340 = vmatpush.msra.mxu0 %v263
    %341 = vmatpush.msra.mxu0 %v262
    %342 = vmatmul.f32.gmra.mxu0 %v324
    %v343 = vpop.f32.mrf.mxu0
    %v344 = vadd.f32 0.0, %v343
    %345 = vdwg.mxu0
    %v346 = vmul.f32 %v344, 0.35355338
    %vm347 = vcmask 31744
    %v348 = vsel %vm347, %v318, -inf
    %v349 = vsel %vm347, %v319, -inf
    %v350 = vmax.f32 %v348, %v349
    %v351 = vrot.slane %v350, 4
    %v352 = vmax.f32 %v350, %v351
    %v353 = vrot.slane %v352, 2
    %v354 = vmax.f32 %v352, %v353
    %v355 = vrot.slane %v354, 1
    %v356 = vmax.f32 %v354, %v355
    %v357 = vsel %vm347, %v320, -inf
    %v358 = vsel %vm347, %v321, -inf
    %v359 = vmax.f32 %v357, %v358
    %v360 = vrot.slane %v359, 4
    %v361 = vmax.f32 %v359, %v360
    %v362 = vrot.slane %v361, 2
    %v363 = vmax.f32 %v361, %v362
    %v364 = vrot.slane %v363, 1
    %v365 = vmax.f32 %v363, %v364
    %v367 = vrot.slane %v346, 1
    %v370 = vmax.f32 %v356, %v346
    %v371 = vmax.f32 %v365, %v367
    %v374 = vrot.slane %v371, 7
    %v375 = vsel %vm163, %v374, %v370
    %v377 = vsub.f32 %v346, %v375
    %v378 = vmul.f32 %v377, 1.442695
    %v379 = vpow.pop %v378
    %v380 = vperm.slane %v370, 0
    %v381 = vperm.slane %v371, 0
    %v382 = vsub.f32 %v318, %v380
    %v383 = vsub.f32 %v319, %v380
    %v384 = vsub.f32 %v320, %v381
    %v385 = vsub.f32 %v321, %v381
    %v386 = vmul.f32 %v382, 1.442695
    %v387 = vpow.pop %v386
    %v388 = vmul.f32 %v383, 1.442695
    %v389 = vpow.pop %v388
    %v390 = vmul.f32 %v384, 1.442695
    %v391 = vpow.pop %v390
    %v392 = vmul.f32 %v385, 1.442695
    %v393 = vpow.pop %v392
    %v394 = vsel %vm347, %v387, 0.0
    %v395 = vsel %vm347, %v389, 0.0
    %v396 = vadd.f32 %v394, %v395
    %v397 = vrot.slane %v396, 4
    %v398 = vadd.f32 %v396, %v397
    %v399 = vrot.slane %v398, 2
    %v400 = vadd.f32 %v398, %v399
    %v401 = vrot.slane %v400, 1
    %v402 = vadd.f32 %v400, %v401
    %v403 = vsel %vm347, %v391, 0.0
    %v404 = vsel %vm347, %v393, 0.0
    %v405 = vadd.f32 %v403, %v404
    %v406 = vrot.slane %v405, 4
    %v407 = vadd.f32 %v405, %v406
    %v408 = vrot.slane %v407, 2
    %v409 = vadd.f32 %v407, %v408
    %v410 = vrot.slane %v409, 1
    %v411 = vadd.f32 %v409, %v410
    %v413 = vrot.slane %v379, 1
    %v416 = vadd.f32 %v402, %v379
    %v417 = vadd.f32 %v411, %v413
    %v418 = vrcp.pop %v416
    %v419 = vmul.f32 %v416, %v418
    %v420 = vsub.f32 1.0, %v419
    %v421 = vmul.f32 %v418, %v420
    %v422 = vadd.f32 %v418, %v421
    %vm423 = vweird.f32 %v416
    %vm424 = vweird.f32 %v418
    %vm425 = vmor %vm423, %vm424
    %v426 = vsel %vm425, %v418, %v422
    %v427 = vand.u32 2147483647, %v416
    %vm428 = vcmp.eq.f32.partialorder %v427, 8.507059e+37
    %v429 = vand.u32 %v416, 2147483648
    %v430 = vor.u32 1.1754944e-38, %v429
    %v431 = vsel %vm428, %v430, %v426
    %v432 = vmul.f32 1.0, %v431
    %v433 = vrcp.pop %v417
    %v434 = vmul.f32 %v417, %v433
    %v435 = vsub.f32 1.0, %v434
    %v436 = vmul.f32 %v433, %v435
    %v437 = vadd.f32 %v433, %v436
    %vm438 = vweird.f32 %v417
    %vm439 = vweird.f32 %v433
    %vm440 = vmor %vm438, %vm439
    %v441 = vsel %vm440, %v433, %v437
    %v442 = vand.u32 2147483647, %v417
    %vm443 = vcmp.eq.f32.partialorder %v442, 8.507059e+37
    %v444 = vand.u32 %v417, 2147483648
    %v445 = vor.u32 1.1754944e-38, %v444
    %v446 = vsel %vm443, %v445, %v441
    %v447 = vmul.f32 1.0, %v446
    %v450 = vrot.slane %v447, 7
    %v451 = vsel %vm163, %v450, %v432
    %v453 = vmul.f32 %v379, %v451
    %v454 = vperm.slane %v432, 0
    %v455 = vperm.slane %v447, 0
    %v456 = vmul.f32 %v387, %v454
    %v457 = vmul.f32 %v389, %v454
    %v458 = vmul.f32 %v391, %v455
    %v459 = vmul.f32 %v393, %v455
    %v461 = vsel %vm347, %v453, 0
    %vm463 = vcmask 1043456
    %v465 = vsel %vm463, %v266, 0
    %467 = vmatpush.msra.mxu0 0.0
    %468 = vmatpush.msra.mxu0 0.0
    %469 = vmatpush.msra.mxu0 0.0
    %470 = vmatpush.msra.mxu0 0.0
    %471 = vmatpush.msra.mxu0 0.0
    %472 = vmatpush.msra.mxu0 0.0
    %473 = vmatpush.msra.mxu0 0.0
    %474 = vmatpush.msra.mxu0 0.0
    %475 = vmatpush.msra.mxu0 0.0
    %476 = vmatpush.msra.mxu0 0.0
    %477 = vmatpush.msra.mxu0 0.0
    %478 = vmatpush.msra.mxu0 0.0
    %479 = vmatpush.msra.mxu0 0.0
    %480 = vmatpush.msra.mxu0 0.0
    %481 = vmatpush.msra.mxu0 0.0
    %482 = vmatpush.msra.mxu0 %v465
    %483 = vmatmul.f32.gmra.mxu0 %v461
    %v484 = vpop.f32.mrf.mxu0
    %v485 = vadd.f32 0.0, %v484
    %486 = vdwg.mxu0
    %v488 = vsel %vm347, %v456, 0
    %v491 = vsel %vm347, %v457, 0
    %v494 = vsel %vm347, %v458, 0
    %v497 = vsel %vm347, %v459, 0
    %499 = vmatpush.msra.mxu0 0.0
    %500 = vmatpush.msra.mxu0 0.0
    %501 = vmatpush.msra.mxu0 0.0
    %502 = vmatpush.msra.mxu0 0.0
    %503 = vmatpush.msra.mxu0 0.0
    %504 = vmatpush.msra.mxu0 0.0
    %505 = vmatpush.msra.mxu0 0.0
    %506 = vmatpush.msra.mxu0 0.0
    %507 = vmatpush.msra.mxu0 0.0
    %508 = vmatpush.msra.mxu0 0.0
    %509 = vmatpush.msra.mxu0 0.0
    %510 = vmatpush.msra.mxu0 0.0
    %511 = vmatpush.msra.mxu0 0.0
    %512 = vmatpush.msra.mxu0 0.0
    %513 = vmatpush.msra.mxu0 0.0
    %514 = vmatpush.msra.mxu0 %v465
    %515 = vmatmul.f32.gmra.mxu0 %v488
    %v516 = vpop.f32.mrf.mxu0
    %v517 = vadd.f32 0.0, %v516
    %518 = vmatmul.f32.gmra.mxu0 %v491
    %v519 = vpop.f32.mrf.mxu0
    %v520 = vadd.f32 0.0, %v519
    %521 = vmatmul.f32.gmra.mxu0 %v494
    %v522 = vpop.f32.mrf.mxu0
    %v523 = vadd.f32 0.0, %v522
    %524 = vmatmul.f32.gmra.mxu0 %v497
    %v525 = vpop.f32.mrf.mxu0
    %v526 = vadd.f32 0.0, %v525
    %527 = vdwg.mxu0
    %529 = vrot.lane.b32.xlu0 %v224, 96
    %v530 = vpop.permute.xlu0 %529
    %v532 = vmul.f32 %v485, %v530
    %537 = vrot.lane.b32.xlu0 %v253, 96
    %v538 = vpop.permute.xlu0 %537
    %539 = vrot.lane.b32.xlu0 %v255, 96
    %v540 = vpop.permute.xlu0 %539
    %541 = vrot.lane.b32.xlu0 %v258, 96
    %v542 = vpop.permute.xlu0 %541
    %543 = vrot.lane.b32.xlu0 %v260, 96
    %v544 = vpop.permute.xlu0 %543
    %v549 = vmul.f32 %v517, %v538
    %v550 = vmul.f32 %v520, %v540
    %v551 = vmul.f32 %v523, %v542
    %v552 = vmul.f32 %v526, %v544
    %v553 = vsel %vm109, %v549, 0.0
    %v554 = vsel %vm109, %v550, 0.0
    %v555 = vadd.f32 %v553, %v554
    %v556 = vrot.slane %v555, 4
    %v557 = vadd.f32 %v555, %v556
    %v558 = vrot.slane %v557, 2
    %v559 = vadd.f32 %v557, %v558
    %v560 = vrot.slane %v559, 1
    %v561 = vadd.f32 %v559, %v560
    %v562 = vsel %vm109, %v551, 0.0
    %v563 = vsel %vm109, %v552, 0.0
    %v564 = vadd.f32 %v562, %v563
    %v565 = vrot.slane %v564, 4
    %v566 = vadd.f32 %v564, %v565
    %v567 = vrot.slane %v566, 2
    %v568 = vadd.f32 %v566, %v567
    %v569 = vrot.slane %v568, 1
    %v570 = vadd.f32 %v568, %v569
    %v573 = vsel %vm163, %v570, %v561
    %v575 = vadd.f32 %v532, %v573
    %v576 = vpack.c.bf16 %v575, %v575
    %v577 = vld [vmem:[#allocation8] sm:$0xf]
    %v578 = vld [vmem:[#allocation8 + $0x4] sm:$0xf]
    %v579 = vld [vmem:[#allocation8 + $0x8] sm:$0xf]
    %v580 = vld [vmem:[#allocation8 + $0xc] sm:$0xf]
    %v581 = vld [vmem:[%s8] sm:$0x1]
    %v583 = vperm.slane %v581, 0
    %v589 = vunpack.c.l.b16 %v577
    %v590 = vunpack.c.l.b16 %v578
    %v591 = vunpack.c.l.b16 %v579
    %v592 = vunpack.c.l.b16 %v580
    %v593 = vpack.c.b16 %v590, %v589
    %v594 = vpack.c.b16 %v592, %v591
    %v598 = vsel %vm109, %v576, 0
    %600 = vmatpush.bf16.msra.mxu0 0
    %601 = vmatpush.bf16.msra.mxu0 0
    %602 = vmatpush.bf16.msra.mxu0 0
    %603 = vmatpush.bf16.msra.mxu0 0
    %604 = vmatpush.bf16.msra.mxu0 0
    %605 = vmatpush.bf16.msra.mxu0 0
    %606 = vmatpush.bf16.msra.mxu0 %v594
    %607 = vmatpush.bf16.msra.mxu0 %v593
    %608 = vmatmul.bf16.gmra.mxu0 %v598
    %v609 = vpop.f32.mrf.mxu0
    %v610 = vadd.f32 %v583, %v609
    %v611 = vpop.f32.mrf.mxu0
    %612 = vdwg.mxu0
    %613 = vst [vmem:[#allocation10] sm:$0x3] %v610
    // Predicated region
    $region62: #{tpu_custom_call.1} parent=1 // pred_check
      _
    $region63: #{tpu_custom_call.1} parent=1 // pred_check_branch
      %615 = sbr.rel (0) target = $region65
    $region64: #{tpu_custom_call.1} parent=1 // pred_region
      %617 = vsyncadd [#allocation4], 0
      %s619 = sshll.u32 [#allocation10], 4
      %s620 = int_to_ptr.vmem [resolvable:$true] %s619
      %s621 = sshll.u32 %s11, 4
      %s622 = int_to_ptr.hbm [resolvable:$true] %s621
      %624 = dma.vmem_to_hbm [thread:$0]  %s620, 32, %s622, [#allocation4]
    $region65: #{tpu_custom_call.1} parent=1 // pred_fallthru
      _
    // Predicated region
    $region66: #{tpu_custom_call.1} parent=1 // pred_check
      _
    $region67: #{tpu_custom_call.1} parent=1 // pred_check_branch
      %626 = sbr.rel (0) target = $region69
    $region68: #{tpu_custom_call.1} parent=1 // pred_region
      %628 = dma.done [#allocation4], 32
    $region69: #{tpu_custom_call.1} parent=1 // pred_fallthru
      _
    %629 = vsyncpa [#allocation3], 1
    %630 = vsyncpa [#allocation6], 1
    %631 = vsyncpa [#allocation9], 1
    %632 = vsyncpa [#allocation4], 1

</llo_original>
